<compile_context>
chip_gen: v6e
topology: v6e:2x2x1
jax: 0.10.0
libtpu: 0.0.40
codegen_flags: <defaults>
</compile_context>

<pallas_src>
import math
from functools import partial, lru_cache

import numpy as np
import jax
import jax.numpy as jnp
from jax import lax
from jax.experimental import pallas as pl
from jax.experimental.pallas import tpu as pltpu


# 32768 lanes x 8 sublanes x 4B = 1 MiB per block; with double-buffered input
# + output that is ~4-5 MiB per step -> inside the scoped-VMEM limit on
# v5e/v6e/v7x while amortizing the per-grid-step overhead.  (Could go to 64K
# lanes on v7x; 32K is safe on every generation.)
_LANE_TILE_CAP = 32768


# ----------------------------------------------------------------------------
# Diffusion schedule (linear betas, as in denoising_diffusion_pytorch)
# ----------------------------------------------------------------------------
def _alphas_cumprod(timesteps=1000):
    scale = 1000.0 / timesteps
    betas = np.linspace(scale * 1e-4, scale * 0.02, timesteps, dtype=np.float64)
    return np.cumprod(1.0 - betas)


# ----------------------------------------------------------------------------
# Layout helpers
# ----------------------------------------------------------------------------
def _pack_factor(C, HW):
    """Pixel-group packing g so the sublane dim (g*C) fills f32 vregs (8)."""
    for g in range(1, 9):
        if (C * g) % 8 == 0 and HW % g == 0:
            return g
    g = max(1, 8 // C)                       # fallback: best partial fill
    while g > 1 and HW % g:
        g //= 2
    return g


def _choose_tile(hwp, n_batch, cap=_LANE_TILE_CAP):
    """Lane tile over the per-image packed pixel axis."""
    if n_batch < 2 and hwp >= 256 and hwp % 256 == 0:
        # keep >= 2 parallel grid steps so both v7x TensorCores get work
        cap = min(cap, hwp // 2)
    if hwp <= cap:
        return hwp
    if hwp % 128 == 0:
        t = (cap // 128) * 128
        while t >= 128:
            if hwp % t == 0:
                return t
            t -= 128
    return hwp                               # full-extent escape


def _choose_chunk(tile, g_hd):
    """Inner-loop chunk so the (g_hd, chunk) hidden activation stays in vregs."""
    cap = max(128, ((64 * 1024) // (4 * g_hd)) // 128 * 128)
    if tile <= cap or tile % 128:
        return tile
    ch = cap
    while ch >= 128:
        if tile % ch == 0:
            return ch
        ch -= 128
    return tile


# ----------------------------------------------------------------------------
# Pallas kernel: x_start prediction with the synthetic per-pixel MLP denoiser.
# Compiled once per (N, gC, gHd, hwp, tile, chunk, dtype) — timestep scalars
# arrive as data (SMEM scalar + tiny pre-scaled weights).
# ----------------------------------------------------------------------------
@lru_cache(maxsize=None)
def _get_denoise_call(N, gC, gHd, hwp, tile, chunk, io_dtype_name):
    nt = hwp // tile
    n_chunks = tile // chunk
    io_dtype = jnp.dtype(io_dtype_name)

    def kernel(scale_ref, x_ref, w1_ref, bias_ref, w2s_ref, b2s_ref, o_ref):
        inv_s0 = scale_ref[0]                         # 1/sqrt(acp_t), SMEM scalar
        w1 = w1_ref[...].astype(jnp.float32)          # (gHd, gC)   tiny, grid-invariant
        w2s = w2s_ref[...].astype(jnp.float32)        # (gC, gHd)   pre-scaled by -(s1/s0)
        # Hoisted broadcasts (JAX does not CSE broadcast_in_dim across chunks).
        bias_b = jnp.broadcast_to(bias_ref[...].astype(jnp.float32), (gHd, chunk))
        b2s_b = jnp.broadcast_to(b2s_ref[...].astype(jnp.float32), (gC, chunk))

        def do_chunk(ci):
            start = ci * chunk
            if not isinstance(start, int):
                start = pl.multiple_of(start, chunk)
            x = x_ref[:, pl.ds(start, chunk)].astype(jnp.float32)     # (gC, chunk)
            # synthetic per-pixel MLP noise predictor, timestep pre-folded:
            #   x0 = inv_s0 * x + W2s @ gelu(W1 @ x + bias) + b2s
            h = jnp.dot(w1, x, preferred_element_type=jnp.float32)    # (gHd, chunk)
            h = jax.nn.gelu(h + bias_b, approximate=True)
            y = jnp.dot(w2s, h, preferred_element_type=jnp.float32)   # (gC, chunk)
            x0 = jnp.clip(inv_s0 * x + y + b2s_b, -1.0, 1.0)
            o_ref[:, pl.ds(start, chunk)] = x0.astype(io_dtype)

        if n_chunks == 1:
            do_chunk(0)
        else:
            pl.loop(0, n_chunks, unroll=(n_chunks <= 8))(do_chunk)

    return pl.pallas_call(
        kernel,
        out_shape=jax.ShapeDtypeStruct((N, gC, hwp), io_dtype),
        grid_spec=pltpu.PrefetchScalarGridSpec(
            num_scalar_prefetch=0,
            grid=(N, nt),
            in_specs=[
                # runtime timestep scalar (1,) f32 in SMEM — no recompilation
                pl.BlockSpec(memory_space=pltpu.MemorySpace.SMEM),
                # big slab: batch squeezed, (gC, tile) lane-dense view
                pl.BlockSpec((pl.Squeezed(), gC, tile), lambda n, j: (n, 0, j)),
                pl.BlockSpec((gHd, gC), lambda n, j: (0, 0)),   # packed W1
                pl.BlockSpec((gHd, 1), lambda n, j: (0, 0)),    # packed b1 + temb(t)
                pl.BlockSpec((gC, gHd), lambda n, j: (0, 0)),   # packed, scaled W2
                pl.BlockSpec((gC, 1), lambda n, j: (0, 0)),     # packed, scaled b2
            ],
            out_specs=pl.BlockSpec((pl.Squeezed(), gC, tile),
                                   lambda n, j: (n, 0, j)),
        ),
        compiler_params=pltpu.CompilerParams(
            dimension_semantics=("parallel", "parallel"),
            vmem_limit_bytes=32 * 1024 * 1024),
    )


def _predict_x0(x, step_no, w1p, b1, w2p, b2, acp, freqs, pack, storage):
    """p_sample(x, t)[1] with clip_denoised=True (synthetic denoiser)."""
    N, C, H, W = x.shape
    HW = H * W
    g = pack
    gC = g * C
    gHd = w1p.shape[0]
    hwp = HW // g
    io_dtype = jnp.dtype(storage)

    acp_t = acp[step_no]
    s0 = jnp.sqrt(acp_t)
    ratio = jnp.sqrt(1.0 - acp_t) / s0
    inv_s0 = (1.0 / s0).reshape(1).astype(jnp.float32)

    # sinusoidal time embedding folded into the first-layer bias (tiny op)
    t = step_no.astype(jnp.float32)
    temb = jnp.concatenate([jnp.sin(t * freqs), jnp.cos(t * freqs)]).reshape(-1, 1)
    bias_p = jnp.repeat(b1 + temb, g, axis=0).astype(jnp.float32)        # (gHd, 1)
    # fold -(sqrt(1-acp_t)/sqrt(acp_t)) into the tiny second layer, not the slab
    w2sp = (-ratio * w2p).astype(jnp.float32)                            # (gC, gHd)
    b2sp = jnp.repeat(-ratio * b2, g, axis=0).astype(jnp.float32)        # (gC, 1)

    # free reshape (contiguous-dim split): no transpose, no pad
    xf = x.reshape(N, gC, hwp).astype(io_dtype)

    tile = _choose_tile(hwp, N)
    chunk = _choose_chunk(tile, gHd)
    denoise = _get_denoise_call(N, gC, gHd, hwp, tile, chunk, io_dtype.name)
    x0 = denoise(inv_s0, xf, w1p, bias_p, w2sp, b2sp)
    return x0.reshape(N, C, H, W).astype(x.dtype)


def _predict_x0_ref(x, step_no, w1, b1, w2, b2, acp, freqs):
    """Pure-JAX reference of the same synthetic p_sample(x, t)[1] arithmetic."""
    N, C, H, W = x.shape
    acp_t = acp[step_no]
    s0 = jnp.sqrt(acp_t)
    s1 = jnp.sqrt(1.0 - acp_t)
    t = step_no.astype(jnp.float32)
    temb = jnp.concatenate([jnp.sin(t * freqs), jnp.cos(t * freqs)]).reshape(-1, 1)
    xf = x.reshape(N, C, H * W).astype(jnp.float32)
    h = jax.nn.gelu(jnp.einsum("fc,nct->nft", w1, xf) + (b1 + temb)[None],
                    approximate=True)
    eps = jnp.einsum("cf,nft->nct", w2, h) + b2[None]
    x0 = jnp.clip((xf - s1 * eps) / s0, -1.0, 1.0)
    return x0.reshape(N, C, H, W)


# ----------------------------------------------------------------------------
# Transforms (pure permutations -> JAX glue, fully traced)
# ----------------------------------------------------------------------------
def _rotation_static(x, k):
    return jnp.rot90(x, k=k, axes=(2, 3))


def _rotation_dyn(x, aug):
    # requires square H == W (asserted in __call__ for the mixing path)
    return lax.switch(aug, [partial(_rotation_static, k=k) for k in range(4)], x)


def _cutperm_static(x, aug_index):
    H, W = x.shape[2], x.shape[3]
    h_mid, w_mid = H // 2, W // 2
    if aug_index // 2 == 1:
        x = jnp.concatenate([x[:, :, h_mid:, :], x[:, :, :h_mid, :]], axis=2)
    if aug_index % 2 == 1:
        x = jnp.concatenate([x[:, :, :, w_mid:], x[:, :, :, :w_mid]], axis=3)
    return x


def _cutperm_dyn(x, aug):
    return lax.switch(aug, [partial(_cutperm_static, aug_index=a) for a in range(4)], x)


# ----------------------------------------------------------------------------
# One jitted program for the whole diffusion + transform path (no host syncs)
# ----------------------------------------------------------------------------
@partial(jax.jit, static_argnames=(
    "transform", "aug_index", "do_diffusion", "random_step",
    "step_scale", "timesteps", "max_range", "pack", "storage"))
def _forward(x, key, diffusion_offset, diffusion_upper_offset,
             w1p, b1, w2p, b2, acp, freqs, *,
             transform, aug_index, do_diffusion, random_step,
             step_scale, timesteps, max_range, pack, storage):
    k_step, k_aug, k_mask = jax.random.split(key, 3)

    if do_diffusion:
        if random_step:
            sample = (jax.random.uniform(k_step)
                      * (diffusion_upper_offset - diffusion_offset)
                      + diffusion_offset)
            step_no = (sample * step_scale).astype(jnp.int32)
        else:
            step_no = (diffusion_offset * step_scale).astype(jnp.int32)
        step_no = jnp.clip(step_no, 0, timesteps - 1)
        x = _predict_x0(x, step_no, w1p, b1, w2p, b2, acp, freqs, pack, storage)

    tfm_static = _rotation_static if transform == "rotation" else _cutperm_static
    tfm_dyn = _rotation_dyn if transform == "rotation" else _cutperm_dyn

    if aug_index is None:
        aug = jax.random.randint(k_aug, (), 0, 4)
        transformed = tfm_dyn(x, aug)
        mask = jax.random.bernoulli(k_mask, 0.5, (x.shape[0],))
        mask = mask.astype(x.dtype).reshape(-1, 1, 1, 1)
        out = mask * x + (1.0 - mask) * transformed
    else:
        out = tfm_static(x, aug_index % max_range)
    return out


# ----------------------------------------------------------------------------
# Module equivalent
# ----------------------------------------------------------------------------
class DiffusionCustomTransPallas:
    def __init__(self, hidden=32, max_range=4, step_scale=100, timesteps=1000,
                 transform="rotation", storage_dtype="float32", seed=0):
        assert hidden % 2 == 0
        self.hidden = hidden
        self.max_range = max_range
        self.step_scale = step_scale
        self.timesteps = timesteps
        self.transform = transform
        # "bfloat16" halves slab HBM traffic on v6e/v7x; compute stays f32.
        self.storage_dtype = jnp.dtype(storage_dtype).name
        self.prob = 0.5
        self.acp = jnp.asarray(_alphas_cumprod(timesteps), dtype=jnp.float32)
        half = hidden // 2
        self.freqs = jnp.asarray(
            np.exp(-math.log(10000.0) * np.arange(half) / half), dtype=jnp.float32)
        self._param_keys = jax.random.split(jax.random.PRNGKey(seed + 123), 4)
        self._params = {}   # keyed by (C, pack): synthetic denoiser weights

    def _get_params(self, C, pack):
        key = (C, pack)
        if key not in self._params:
            k1, k2, k3, k4 = self._param_keys
            Hd = self.hidden
            w1 = 0.2 * jax.random.normal(k1, (Hd, C), jnp.float32)
            b1 = 0.05 * jax.random.normal(k2, (Hd, 1), jnp.float32)
            w2 = 0.2 * jax.random.normal(k3, (C, Hd), jnp.float32)
            b2 = 0.05 * jax.random.normal(k4, (C, 1), jnp.float32)
            eye = jnp.eye(pack, dtype=jnp.float32)
            # interleaved block-diagonal expansion matching the
            # (C, HW) -> (pack*C, HW//pack) reshape; built once per (C, pack)
            self._params[key] = dict(
                w1=w1, b1=b1, w2=w2, b2=b2,
                w1p=jnp.kron(w1, eye), w2p=jnp.kron(w2, eye))
        return self._params[key]

    def __call__(self, x, aug_index=None, diffusion=True, diffusion_offset=0.0,
                 diffusion_upper_offset=1.0, random=True, key=None):
        # x: (N, C, H, W) float32, NCHW like PyTorch
        if key is None:
            key = jax.random.PRNGKey(0)
        N, C, H, W = x.shape
        if self.transform == "rotation" and aug_index is None and H != W:
            raise ValueError("rotation mixing path requires square images (H == W)")
        pack = _pack_factor(C, H * W)
        p = self._get_params(C, pack)
        aug_static = None if aug_index is None else int(aug_index)
        return _forward(
            x.astype(jnp.float32), key,
            float(diffusion_offset), float(diffusion_upper_offset),
            p["w1p"], p["b1"], p["w2p"], p["b2"], self.acp, self.freqs,
            transform=self.transform,
            aug_index=aug_static,
            do_diffusion=bool(diffusion),
            random_step=bool(random),
            step_scale=self.step_scale,
            timesteps=self.timesteps,
            max_range=self.max_range,
            pack=pack,
            storage=self.storage_dtype)


# ----------------------------------------------------------------------------
if __name__ == "__main__":
    key = jax.random.PRNGKey(0)
    x = jax.random.normal(key, (2, 4, 16, 16), dtype=jnp.float32)  # NCHW

    module = DiffusionCustomTransPallas(hidden=32, transform="rotation", seed=0)

    # --- Pallas kernel vs pure-JAX reference on the p_sample x0 path -------
    N, C, H, W = x.shape
    pack = _pack_factor(C, H * W)
    p = module._get_params(C, pack)
    step_no = jnp.asarray(25, jnp.int32)
    x0_pal = jax.block_until_ready(
        _predict_x0(x, step_no, p["w1p"], p["b1"], p["w2p"], p["b2"],
                    module.acp, module.freqs, pack, "float32"))
    x0_ref = jax.block_until_ready(
        _predict_x0_ref(x, step_no, p["w1"], p["b1"], p["w2"], p["b2"],
                        module.acp, module.freqs))
    err = float(jnp.max(jnp.abs(x0_pal - x0_ref)))
    assert err < 1e-4, f"Pallas x0 mismatch vs reference: {err}"

    # also exercise the multi-chunk inner-loop path (hwp > chunk cap)
    x_big = jax.random.normal(jax.random.PRNGKey(5), (2, 4, 32, 32), jnp.float32)
    x0b_pal = jax.block_until_ready(
        _predict_x0(x_big, step_no, p["w1p"], p["b1"], p["w2p"], p["b2"],
                    module.acp, module.freqs, pack, "float32"))
    x0b_ref = jax.block_until_ready(
        _predict_x0_ref(x_big, step_no, p["w1"], p["b1"], p["w2"], p["b2"],
                        module.acp, module.freqs))
    errb = float(jnp.max(jnp.abs(x0b_pal - x0b_ref)))
    assert errb < 1e-4, f"Pallas x0 (chunked) mismatch vs reference: {errb}"

    # --- module-level paths (deterministic / random / cutperm) -------------
    out_det = jax.block_until_ready(
        module(x, aug_index=1, diffusion=True, random=False,
               diffusion_offset=0.25, key=jax.random.PRNGKey(1)))
    out_det2 = jax.block_until_ready(           # same compiled program, new offset
        module(x, aug_index=1, diffusion=True, random=False,
               diffusion_offset=0.75, key=jax.random.PRNGKey(4)))
    out_rand = jax.block_until_ready(
        module(x, aug_index=None, diffusion=True, random=True,
               key=jax.random.PRNGKey(2)))
    module_cp = DiffusionCustomTransPallas(hidden=32, transform="cutperm", seed=0)
    out_cp = jax.block_until_ready(
        module_cp(x, aug_index=3, diffusion=True, random=False,
                  diffusion_offset=0.5, key=jax.random.PRNGKey(3)))

    for o in (out_det, out_det2, out_rand, out_cp):
        assert o.shape == (2, 4, 16, 16)
        assert bool(jnp.all(jnp.isfinite(o)))
        assert bool(jnp.all(jnp.abs(o) <= 1.0 + 1e-6))  # clip_denoised semantics

    print("KERNEL_OK")
</pallas_src>

<mosaic_0001>
module attributes {stable_mosaic.version = 11 : i64} {
  func.func @kernel(%arg0: i32, %arg1: i32, %arg2: memref<1xf32, #tpu.memory_space<smem>>, %arg3: memref<1x8x128xf32, #tpu.memory_space<vmem>>, %arg4: memref<64x8xf32, #tpu.memory_space<vmem>>, %arg5: memref<64x1xf32, #tpu.memory_space<vmem>>, %arg6: memref<8x64xf32, #tpu.memory_space<vmem>>, %arg7: memref<8x1xf32, #tpu.memory_space<vmem>>, %arg8: memref<1x8x128xf32, #tpu.memory_space<vmem>>) attributes {dimension_semantics = [#tpu.dimension_semantics<parallel>, #tpu.dimension_semantics<parallel>], iteration_bounds = array<i64: 2, 1>, scalar_prefetch = 0 : i64, scratch_operands = 0 : i64, tpu.core_type = #tpu.core_type<tc>, window_params = [{transform_indices = @transform_0, window_bounds = array<i64: 1>}, {transform_indices = @transform_1, window_bounds = array<i64: 1, 8, 128>}, {pipeline_mode = #tpu.pipeline_mode<synchronous>, transform_indices = @transform_2, window_bounds = array<i64: 64, 8>}, {pipeline_mode = #tpu.pipeline_mode<synchronous>, transform_indices = @transform_3, window_bounds = array<i64: 64, 1>}, {pipeline_mode = #tpu.pipeline_mode<synchronous>, transform_indices = @transform_4, window_bounds = array<i64: 8, 64>}, {pipeline_mode = #tpu.pipeline_mode<synchronous>, transform_indices = @transform_5, window_bounds = array<i64: 8, 1>}, {transform_indices = @transform_6, window_bounds = array<i64: 1, 8, 128>}]} {
    %c0 = arith.constant 0 : index
    %0 = memref.load %arg2[%c0] : memref<1xf32, #tpu.memory_space<smem>>
    %c0_0 = arith.constant 0 : index
    %c0_1 = arith.constant 0 : index
    %1 = vector.load %arg4[%c0_0, %c0_1] : memref<64x8xf32, #tpu.memory_space<vmem>>, vector<64x8xf32>
    %c0_2 = arith.constant 0 : index
    %c0_3 = arith.constant 0 : index
    %2 = vector.load %arg6[%c0_2, %c0_3] : memref<8x64xf32, #tpu.memory_space<vmem>>, vector<8x64xf32>
    %c0_4 = arith.constant 0 : index
    %c0_5 = arith.constant 0 : index
    %3 = vector.load %arg5[%c0_4, %c0_5] : memref<64x1xf32, #tpu.memory_space<vmem>>, vector<64x1xf32>
    %4 = vector.shape_cast %3 : vector<64x1xf32> to vector<64x1xf32>
    %5 = vector.broadcast %4 : vector<64x1xf32> to vector<64x128xf32>
    %c0_6 = arith.constant 0 : index
    %c0_7 = arith.constant 0 : index
    %6 = vector.load %arg7[%c0_6, %c0_7] : memref<8x1xf32, #tpu.memory_space<vmem>>, vector<8x1xf32>
    %7 = vector.shape_cast %6 : vector<8x1xf32> to vector<8x1xf32>
    %8 = vector.broadcast %7 : vector<8x1xf32> to vector<8x128xf32>
    %c0_8 = arith.constant 0 : index
    %c0_9 = arith.constant 0 : index
    %c0_10 = arith.constant 0 : index
    %9 = vector.load %arg3[%c0_8, %c0_9, %c0_10] : memref<1x8x128xf32, #tpu.memory_space<vmem>>, vector<1x8x128xf32>
    %10 = vector.shape_cast %9 : vector<1x8x128xf32> to vector<8x128xf32>
    %cst = arith.constant dense<0.000000e+00> : vector<64x128xf32>
    %11 = tpu.matmul %1, %10, %cst {dimension_numbers = #tpu.dot_dimension_numbers<[1], [0], [0], [1], [0, 0, 1, 1], [], []>} : vector<64x8xf32>, vector<8x128xf32>, vector<64x128xf32> -> vector<64x128xf32>
    %12 = arith.addf %11, %5 : vector<64x128xf32>
    %13 = arith.mulf %12, %12 : vector<64x128xf32>
    %14 = arith.mulf %12, %13 : vector<64x128xf32>
    %cst_11 = arith.constant 4.471500e-02 : f32
    %15 = vector.broadcast %cst_11 : f32 to vector<64x128xf32>
    %16 = arith.mulf %15, %14 : vector<64x128xf32>
    %17 = arith.addf %12, %16 : vector<64x128xf32>
    %cst_12 = arith.constant 0.797884583 : f32
    %18 = vector.broadcast %cst_12 : f32 to vector<64x128xf32>
    %19 = arith.mulf %18, %17 : vector<64x128xf32>
    %20 = math.tanh %19 : vector<64x128xf32>
    %cst_13 = arith.constant 1.000000e+00 : f32
    %21 = vector.broadcast %cst_13 : f32 to vector<64x128xf32>
    %22 = arith.addf %21, %20 : vector<64x128xf32>
    %cst_14 = arith.constant 5.000000e-01 : f32
    %23 = vector.broadcast %cst_14 : f32 to vector<64x128xf32>
    %24 = arith.mulf %23, %22 : vector<64x128xf32>
    %25 = arith.mulf %12, %24 : vector<64x128xf32>
    %cst_15 = arith.constant dense<0.000000e+00> : vector<8x128xf32>
    %26 = tpu.matmul %2, %25, %cst_15 {dimension_numbers = #tpu.dot_dimension_numbers<[1], [0], [0], [1], [0, 0, 1, 1], [], []>} : vector<8x64xf32>, vector<64x128xf32>, vector<8x128xf32> -> vector<8x128xf32>
    %27 = vector.broadcast %0 : f32 to vector<8x128xf32>
    %28 = arith.mulf %27, %10 : vector<8x128xf32>
    %29 = arith.addf %28, %26 : vector<8x128xf32>
    %30 = arith.addf %29, %8 : vector<8x128xf32>
    %cst_16 = arith.constant -1.000000e+00 : f32
    %cst_17 = arith.constant 1.000000e+00 : f32
    %31 = vector.broadcast %cst_16 : f32 to vector<8x128xf32>
    %32 = arith.maximumf %31, %30 : vector<8x128xf32>
    %33 = vector.broadcast %cst_17 : f32 to vector<8x128xf32>
    %34 = arith.minimumf %33, %32 : vector<8x128xf32>
    %c0_18 = arith.constant 0 : index
    %c0_19 = arith.constant 0 : index
    %c0_20 = arith.constant 0 : index
    %35 = vector.load %arg8[%c0_18, %c0_19, %c0_20] : memref<1x8x128xf32, #tpu.memory_space<vmem>>, vector<1x8x128xf32>
    %36 = vector.shape_cast %35 : vector<1x8x128xf32> to vector<8x128xf32>
    %37 = vector.shape_cast %34 : vector<8x128xf32> to vector<1x8x128xf32>
    tpu.vector_store %arg8[%c0_18, %c0_19, %c0_20], %37 {strides = array<i32>} : memref<1x8x128xf32, #tpu.memory_space<vmem>>, vector<1x8x128xf32>,
    return
  }
  func.func @transform_0(%arg0: i32, %arg1: i32) -> i32 {
    %c0_i32 = arith.constant 0 : i32
    %c0_i32_0 = arith.constant 0 : i32
    return %c0_i32 : i32
  }
  func.func @transform_1(%arg0: i32, %arg1: i32) -> (i32, i32, i32) {
    %c0_i32 = arith.constant 0 : i32
    %c0_i32_0 = arith.constant 0 : i32
    return %arg0, %c0_i32, %arg1 : i32, i32, i32
  }
  func.func @transform_2(%arg0: i32, %arg1: i32) -> (i32, i32) {
    %c0_i32 = arith.constant 0 : i32
    %c0_i32_0 = arith.constant 0 : i32
    %c0_i32_1 = arith.constant 0 : i32
    return %c0_i32, %c0_i32_0 : i32, i32
  }
  func.func @transform_3(%arg0: i32, %arg1: i32) -> (i32, i32) {
    %c0_i32 = arith.constant 0 : i32
    %c0_i32_0 = arith.constant 0 : i32
    %c0_i32_1 = arith.constant 0 : i32
    return %c0_i32, %c0_i32_0 : i32, i32
  }
  func.func @transform_4(%arg0: i32, %arg1: i32) -> (i32, i32) {
    %c0_i32 = arith.constant 0 : i32
    %c0_i32_0 = arith.constant 0 : i32
    %c0_i32_1 = arith.constant 0 : i32
    return %c0_i32, %c0_i32_0 : i32, i32
  }
  func.func @transform_5(%arg0: i32, %arg1: i32) -> (i32, i32) {
    %c0_i32 = arith.constant 0 : i32
    %c0_i32_0 = arith.constant 0 : i32
    %c0_i32_1 = arith.constant 0 : i32
    return %c0_i32, %c0_i32_0 : i32, i32
  }
  func.func @transform_6(%arg0: i32, %arg1: i32) -> (i32, i32, i32) {
    %c0_i32 = arith.constant 0 : i32
    %c0_i32_0 = arith.constant 0 : i32
    return %arg0, %c0_i32, %arg1 : i32, i32, i32
  }
}

</mosaic_0001>

<llo_original>
// kernel: tpu_custom_call.1
$region0: #{tpu_custom_call.1}
  #allocation0 [shape = 'u32[]', space=smem, size = 0x4, offset = 0x4, fixed_abs, tag = 'smem constant byte address 0x4 - core index']
  #allocation1 [shape = 'u32[144,128]{1,0:T(1,128)}', space=vmem, size = 0x12000, scoped, tag = 'internal scratch']
  #allocation2 [shape = 'f32[1]{0:T(128)S(6)}', space=smem, size = 0x200, scoped, tag = 'scoped memory for tpu_custom_call.1']
  %s0 = inlined_call_operand.<no memory space> [shape: f32[1], index: 0, kind: input, shape index: {}]
  %s1 = inlined_call_operand.vmem [shape: f32[2,8,128], index: 1, kind: input, shape index: {}]
  %s2 = inlined_call_operand.vmem [shape: f32[64,8], index: 2, kind: input, shape index: {}]
  %s3 = inlined_call_operand.vmem [shape: f32[64,1], index: 3, kind: input, shape index: {}]
  %s4 = inlined_call_operand.vmem [shape: f32[8,64], index: 4, kind: input, shape index: {}]
  %s5 = inlined_call_operand.vmem [shape: f32[8,1], index: 5, kind: input, shape index: {}]
  %s6 = inlined_call_operand.hbm [shape: f32[2,8,128], index: 6, kind: output, shape index: {}]
  %s7 = sld [smem:[#allocation0]]
  $region57: #{tpu_custom_call.1} parent=0
    _
  %s9 = ssub.s32 1, %s7
  %s10 = scalar_select 0, %s9, %s7
  %11 = sst [smem:[#allocation2]] %s0
  $region1: #{tpu_custom_call.1} parent=0
    #allocation3 [shape = 'u8[8192]{0}', space=vmem, size = 0x2000, scoped, tag = 'output window, operand 0']
    #allocation4 [shape = 's32[2]{0}', space=sflag, size = 0x8, scoped, tag = 'scoped memory for tpu_custom_call.1']
    %12 = vsyncpa [#allocation4], 0
    %s13 = scalar_lea.sflag [#allocation4], 1
    %14 = vsyncpa %s13, 0
    loop: start=0, step=1, limit=4
    $region2: #{tpu_custom_call.1} parent=1 // loop_pre_header
      _
    $region3: #{tpu_custom_call.1} parent=1 // loop_header
      %s16 = sphi 0, %s20
      %p17 = scmp.ge.s32.totalorder %s16, 4
      %s23 = sphi 0, %s35
      %s24 = sphi 0, %s31
      %s25 = sphi 0, %s23
      %s26 = sphi 0, %s24
      %s27 = sphi 0, %s25
      %s28 = sphi 0, %s26
      %s36 = sphi 0, %s36
      %s38 = sphi 0, %s36
      %s39 = sphi 0, %s38
      %s53 = sphi 0, %s39
      %s61 = sphi 0, %s63
      %s64 = sphi 0, %s61
      %s65 = sphi 0, %s64
      %s81 = sphi 0, %s65
      %s85 = sphi 0, %s85
      %s87 = sphi 0, %s85
      %s88 = sphi 0, %s87
      %s102 = sphi 0, %s88
      %s106 = sphi 0, %s106
      %s108 = sphi 0, %s106
      %s109 = sphi 0, %s108
      %s123 = sphi 0, %s109
      %s127 = sphi 0, %s127
      %s129 = sphi 0, %s127
      %s130 = sphi 0, %s129
      %s144 = sphi 0, %s130
      %s148 = sphi 0, %s148
      %s150 = sphi 0, %s148
      %s151 = sphi 0, %s150
      %s165 = sphi 0, %s151
      %s173 = sphi 0, %s175
      %s176 = sphi 0, %s173
      %s177 = sphi 0, %s176
      %s193 = sphi 0, %s177
    $region4: #{tpu_custom_call.1} parent=1 // loop_header_branch
      %19 = sbr.rel (%p17) target = $region8
    $region5: #{tpu_custom_call.1} parent=1 // loop_body
      %s21 = ssub.s32 %s16, 1
      %s22 = ssub.s32 %s16, 2
      %s29 = sadd.s32 1, %s24
      %p30 = scmp.ge.s32.totalorder %s29, 1
      %s31 = scalar_select %p30, 0, %s29
      %s32 = sadd.s32 1, %s23
      %s33 = scalar_select %p30, %s32, %s23
      %p34 = scmp.ge.s32.totalorder %s33, 2
      %s35 = scalar_select %p34, 0, %s33
      %s37 = sadd.s32 %s36, 1
      %p40 = scmp.eq.s32.totalorder %s16, 1
      %p41 = scmp.ne.s32.totalorder %s36, %s38
      %p42 = scmp.eq.s32.totalorder %s16, 0
      %p43 = por %p41, %p42
      %p44 = scmp.ne.s32.totalorder %s36, %s38
      %p45 = scmp.eq.s32.totalorder %s21, 1
      %p46 = por %p44, %p45
      %p47 = scmp.ne.s32.totalorder %s38, %s39
      %p48 = scmp.eq.s32.totalorder %s21, 0
      %p49 = por %p47, %p48
      %p50 = scmp.ne.s32.totalorder %s38, %s39
      %p51 = scmp.eq.s32.totalorder %s22, 1
      %p52 = por %p50, %p51
      %p54 = scmp.ne.s32.totalorder %s39, %s53
      %p55 = scmp.eq.s32.totalorder %s22, 0
      %p56 = por %p54, %p55
      %s57 = ssub.s32 %s23, %s35
      %s58 = ssub.s32 %s24, %s31
      %s59 = sor.u32 %s57, %s58
      %p60 = scmp.eq.s32.totalorder %s59, 0
      %s62 = sadd.s32 %s61, 1
      %s63 = scalar_select %p60, %s61, %s62
      %p66 = pneg %p60
      %p67 = scmp.eq.s32.totalorder %s16, 1
      %p68 = por %p66, %p67
      %p69 = scmp.ne.s32.totalorder %s61, %s64
      %p70 = scmp.eq.s32.totalorder %s16, 0
      %p71 = por %p69, %p70
      %p72 = scmp.ne.s32.totalorder %s61, %s64
      %p73 = scmp.eq.s32.totalorder %s21, 1
      %p74 = por %p72, %p73
      %p75 = scmp.ne.s32.totalorder %s64, %s65
      %p76 = scmp.eq.s32.totalorder %s21, 0
      %p77 = por %p75, %p76
      %p78 = scmp.ne.s32.totalorder %s64, %s65
      %p79 = scmp.eq.s32.totalorder %s22, 1
      %p80 = por %p78, %p79
      %p82 = scmp.ne.s32.totalorder %s65, %s81
      %p83 = scmp.eq.s32.totalorder %s22, 0
      %p84 = por %p82, %p83
      %s86 = sadd.s32 %s85, 1
      %p89 = scmp.eq.s32.totalorder %s16, 1
      %p90 = scmp.ne.s32.totalorder %s85, %s87
      %p91 = scmp.eq.s32.totalorder %s16, 0
      %p92 = por %p90, %p91
      %p93 = scmp.ne.s32.totalorder %s85, %s87
      %p94 = scmp.eq.s32.totalorder %s21, 1
      %p95 = por %p93, %p94
      %p96 = scmp.ne.s32.totalorder %s87, %s88
      %p97 = scmp.eq.s32.totalorder %s21, 0
      %p98 = por %p96, %p97
      %p99 = scmp.ne.s32.totalorder %s87, %s88
      %p100 = scmp.eq.s32.totalorder %s22, 1
      %p101 = por %p99, %p100
      %p103 = scmp.ne.s32.totalorder %s88, %s102
      %p104 = scmp.eq.s32.totalorder %s22, 0
      %p105 = por %p103, %p104
      %s107 = sadd.s32 %s106, 1
      %p110 = scmp.eq.s32.totalorder %s16, 1
      %p111 = scmp.ne.s32.totalorder %s106, %s108
      %p112 = scmp.eq.s32.totalorder %s16, 0
      %p113 = por %p111, %p112
      %p114 = scmp.ne.s32.totalorder %s106, %s108
      %p115 = scmp.eq.s32.totalorder %s21, 1
      %p116 = por %p114, %p115
      %p117 = scmp.ne.s32.totalorder %s108, %s109
      %p118 = scmp.eq.s32.totalorder %s21, 0
      %p119 = por %p117, %p118
      %p120 = scmp.ne.s32.totalorder %s108, %s109
      %p121 = scmp.eq.s32.totalorder %s22, 1
      %p122 = por %p120, %p121
      %p124 = scmp.ne.s32.totalorder %s109, %s123
      %p125 = scmp.eq.s32.totalorder %s22, 0
      %p126 = por %p124, %p125
      %s128 = sadd.s32 %s127, 1
      %p131 = scmp.eq.s32.totalorder %s16, 1
      %p132 = scmp.ne.s32.totalorder %s127, %s129
      %p133 = scmp.eq.s32.totalorder %s16, 0
      %p134 = por %p132, %p133
      %p135 = scmp.ne.s32.totalorder %s127, %s129
      %p136 = scmp.eq.s32.totalorder %s21, 1
      %p137 = por %p135, %p136
      %p138 = scmp.ne.s32.totalorder %s129, %s130
      %p139 = scmp.eq.s32.totalorder %s21, 0
      %p140 = por %p138, %p139
      %p141 = scmp.ne.s32.totalorder %s129, %s130
      %p142 = scmp.eq.s32.totalorder %s22, 1
      %p143 = por %p141, %p142
      %p145 = scmp.ne.s32.totalorder %s130, %s144
      %p146 = scmp.eq.s32.totalorder %s22, 0
      %p147 = por %p145, %p146
      %s149 = sadd.s32 %s148, 1
      %p152 = scmp.eq.s32.totalorder %s16, 1
      %p153 = scmp.ne.s32.totalorder %s148, %s150
      %p154 = scmp.eq.s32.totalorder %s16, 0
      %p155 = por %p153, %p154
      %p156 = scmp.ne.s32.totalorder %s148, %s150
      %p157 = scmp.eq.s32.totalorder %s21, 1
      %p158 = por %p156, %p157
      %p159 = scmp.ne.s32.totalorder %s150, %s151
      %p160 = scmp.eq.s32.totalorder %s21, 0
      %p161 = por %p159, %p160
      %p162 = scmp.ne.s32.totalorder %s150, %s151
      %p163 = scmp.eq.s32.totalorder %s22, 1
      %p164 = por %p162, %p163
      %p166 = scmp.ne.s32.totalorder %s151, %s165
      %p167 = scmp.eq.s32.totalorder %s22, 0
      %p168 = por %p166, %p167
      %s169 = ssub.s32 %s23, %s35
      %s170 = ssub.s32 %s24, %s31
      %s171 = sor.u32 %s169, %s170
      %p172 = scmp.eq.s32.totalorder %s171, 0
      %s174 = sadd.s32 %s173, 1
      %s175 = scalar_select %p172, %s173, %s174
      %p178 = pneg %p172
      %p179 = scmp.eq.s32.totalorder %s16, 1
      %p180 = por %p178, %p179
      %p181 = scmp.ne.s32.totalorder %s173, %s176
      %p182 = scmp.eq.s32.totalorder %s16, 0
      %p183 = por %p181, %p182
      %p184 = scmp.ne.s32.totalorder %s173, %s176
      %p185 = scmp.eq.s32.totalorder %s21, 1
      %p186 = por %p184, %p185
      %p187 = scmp.ne.s32.totalorder %s176, %s177
      %p188 = scmp.eq.s32.totalorder %s21, 0
      %p189 = por %p187, %p188
      %p190 = scmp.ne.s32.totalorder %s176, %s177
      %p191 = scmp.eq.s32.totalorder %s22, 1
      %p192 = por %p190, %p191
      %p194 = scmp.ne.s32.totalorder %s177, %s193
      %p195 = scmp.eq.s32.totalorder %s22, 0
      %p196 = por %p194, %p195
      %p197 = scmp.le.s32.totalorder 1, %s16
      %p198 = scmp.lt.s32.totalorder %s16, 3
      %p199 = pnand %p197, %p198
      %p200 = pneg %p199
      // Predicated region
      $region9: #{tpu_custom_call.1} parent=5 // pred_check
        _
      $region10: #{tpu_custom_call.1} parent=5 // pred_check_branch
        %202 = sbr.rel (%p199) target = $region12
      $region11: #{tpu_custom_call.1} parent=5 // pred_region
        %s203 = ssub.s32 %s16, 1
        // Predicated region
        $region13: #{tpu_custom_call.1} parent=11 // pred_check
          %p204 = pneg %p49
        $region14: #{tpu_custom_call.1} parent=11 // pred_check_branch
          %206 = sbr.rel (%p204) target = $region16
        $region15: #{tpu_custom_call.1} parent=11 // pred_region
          _
        $region16: #{tpu_custom_call.1} parent=11 // pred_fallthru
          _
        // Predicated region
        $region17: #{tpu_custom_call.1} parent=11 // pred_check
          %p207 = pneg %p98
        $region18: #{tpu_custom_call.1} parent=11 // pred_check_branch
          %209 = sbr.rel (%p207) target = $region20
        $region19: #{tpu_custom_call.1} parent=11 // pred_region
          _
        $region20: #{tpu_custom_call.1} parent=11 // pred_fallthru
          _
        // Predicated region
        $region21: #{tpu_custom_call.1} parent=11 // pred_check
          %p210 = pneg %p119
        $region22: #{tpu_custom_call.1} parent=11 // pred_check_branch
          %212 = sbr.rel (%p210) target = $region24
        $region23: #{tpu_custom_call.1} parent=11 // pred_region
          _
        $region24: #{tpu_custom_call.1} parent=11 // pred_fallthru
          _
        // Predicated region
        $region25: #{tpu_custom_call.1} parent=11 // pred_check
          %p213 = pneg %p140
        $region26: #{tpu_custom_call.1} parent=11 // pred_check_branch
          %215 = sbr.rel (%p213) target = $region28
        $region27: #{tpu_custom_call.1} parent=11 // pred_region
          _
        $region28: #{tpu_custom_call.1} parent=11 // pred_fallthru
          _
        // Predicated region
        $region29: #{tpu_custom_call.1} parent=11 // pred_check
          %p216 = pneg %p161
        $region30: #{tpu_custom_call.1} parent=11 // pred_check_branch
          %218 = sbr.rel (%p216) target = $region32
        $region31: #{tpu_custom_call.1} parent=11 // pred_region
          _
        $region32: #{tpu_custom_call.1} parent=11 // pred_fallthru
          _
      $region12: #{tpu_custom_call.1} parent=5 // pred_fallthru
        _
      %p219 = scmp.lt.s32.totalorder %s16, 2
      // Predicated region
      $region33: #{tpu_custom_call.1} parent=5 // pred_check
        %p220 = pneg %p219
      $region34: #{tpu_custom_call.1} parent=5 // pred_check_branch
        %222 = sbr.rel (%p220) target = $region36
      $region35: #{tpu_custom_call.1} parent=5 // pred_region
        // Predicated region
        $region37: #{tpu_custom_call.1} parent=35 // pred_check
          %p223 = pneg %p71
        $region38: #{tpu_custom_call.1} parent=35 // pred_check_branch
          %225 = sbr.rel (%p223) target = $region40
        $region39: #{tpu_custom_call.1} parent=35 // pred_region
          %p226 = scmp.lt.s32.totalorder %s23, 1
          %s227 = scalar_select %p226, %s23, 1
          %p228 = scmp.lt.s32.totalorder %s24, 0
          %s229 = scalar_select %p228, %s24, 0
          %s230 = sadd.s32 %s229, %s227
          %s231 = smul.addr %s230, 8
          %s232 = scalar_lea.vmem %s1, %s231
        $region40: #{tpu_custom_call.1} parent=35 // pred_fallthru
          _
      $region36: #{tpu_custom_call.1} parent=5 // pred_fallthru
        _
      %p233 = scmp.le.s32.totalorder 1, %s16
      %p234 = scmp.lt.s32.totalorder %s16, 3
      %p235 = pnand %p233, %p234
      %p236 = pneg %p235
      // Predicated region
      $region41: #{tpu_custom_call.1} parent=5 // pred_check
        _
      $region42: #{tpu_custom_call.1} parent=5 // pred_check_branch
        %238 = sbr.rel (%p235) target = $region44
      $region43: #{tpu_custom_call.1} parent=5 // pred_region
        %s239 = ssub.s32 %s16, 1
        %p240 = pneg %p49
        %p241 = pneg %p46
        %p242 = scmp.lt.s32.totalorder %s25, 1
        %s243 = scalar_select %p242, %s25, 1
        %p244 = scmp.lt.s32.totalorder %s26, 0
        %s245 = scalar_select %p244, %s26, 0
        %s246 = sadd.s32 %s245, %s243
        %s247 = smul.addr %s246, 8
        %s248 = scalar_lea.vmem %s1, %s247
        %p249 = pneg %p77
        %p250 = pneg %p74
        %p251 = pneg %p98
        %p252 = pneg %p95
        %p253 = pneg %p119
        %p254 = pneg %p116
        %p255 = pneg %p140
        %p256 = pneg %p137
        %p257 = pneg %p161
        %p258 = pneg %p158
        %p259 = pneg %p189
        %p260 = pneg %p186
        %s261 = sand.u32 %s176, 1
        %s262 = scalar_lea.sflag [#allocation4], %s261
        %s263 = sand.u32 %s176, 1
        %s264 = smul.addr %s263, 8
        %s265 = scalar_lea.vmem [#allocation3], %s264
        %p266 = scmp.lt.s32.totalorder %s25, 1
        %s267 = scalar_select %p266, %s25, 1
        %p268 = scmp.lt.s32.totalorder %s26, 0
        %s269 = scalar_select %p268, %s26, 0
        %s270 = sadd.s32 %s269, %s267
        %s271 = smul.addr %s270, 8
        %s272 = scalar_lea.vmem %s1, %s271
        %s273 = sld [smem:[#allocation2]]
        %v274 = vld [vmem:[%s2] sm:$0xff]
        %v275 = vld [vmem:[%s2 + $0x8] sm:$0xff]
        %v276 = vld [vmem:[%s2 + $0x10] sm:$0xff]
        %v277 = vld [vmem:[%s2 + $0x18] sm:$0xff]
        %v278 = vld [vmem:[%s2 + $0x20] sm:$0xff]
        %v279 = vld [vmem:[%s2 + $0x28] sm:$0xff]
        %v280 = vld [vmem:[%s2 + $0x30] sm:$0xff]
        %v281 = vld [vmem:[%s2 + $0x38] sm:$0xff]
        %v282 = vld [vmem:[%s4] sm:$0xff]
        %v283 = vld [vmem:[%s3] sm:$0xff]
        %v284 = vld [vmem:[%s3 + $0x8] sm:$0xff]
        %v285 = vld [vmem:[%s3 + $0x10] sm:$0xff]
        %v286 = vld [vmem:[%s3 + $0x18] sm:$0xff]
        %v287 = vld [vmem:[%s3 + $0x20] sm:$0xff]
        %v288 = vld [vmem:[%s3 + $0x28] sm:$0xff]
        %v289 = vld [vmem:[%s3 + $0x30] sm:$0xff]
        %v290 = vld [vmem:[%s3 + $0x38] sm:$0xff]
        %292 = vset.pattern.permute.xlu0 0
        %293 = vperm.xlu0 %292, %v283
        %v294 = vpop.permute.xlu0 %293
        %297 = vset.pattern.permute.xlu0 0
        %298 = vperm.xlu0 %297, %v284
        %v299 = vpop.permute.xlu0 %298
        %302 = vset.pattern.permute.xlu0 0
        %303 = vperm.xlu0 %302, %v285
        %v304 = vpop.permute.xlu0 %303
        %307 = vset.pattern.permute.xlu0 0
        %308 = vperm.xlu0 %307, %v286
        %v309 = vpop.permute.xlu0 %308
        %312 = vset.pattern.permute.xlu0 0
        %313 = vperm.xlu0 %312, %v287
        %v314 = vpop.permute.xlu0 %313
        %317 = vset.pattern.permute.xlu0 0
        %318 = vperm.xlu0 %317, %v288
        %v319 = vpop.permute.xlu0 %318
        %322 = vset.pattern.permute.xlu0 0
        %323 = vperm.xlu0 %322, %v289
        %v324 = vpop.permute.xlu0 %323
        %327 = vset.pattern.permute.xlu0 0
        %328 = vperm.xlu0 %327, %v290
        %v329 = vpop.permute.xlu0 %328
        %v331 = vld [vmem:[%s5] sm:$0xff]
        %333 = vset.pattern.permute.xlu0 0
        %334 = vperm.xlu0 %333, %v331
        %v335 = vpop.permute.xlu0 %334
        %v337 = vld [vmem:[%s272] sm:$0xff]
        %vm338 = vcmask 64512
        %v340 = vsel %vm338, %v274, 0
        %v343 = vsel %vm338, %v275, 0
        %v346 = vsel %vm338, %v276, 0
        %v349 = vsel %vm338, %v277, 0
        %v352 = vsel %vm338, %v278, 0
        %v355 = vsel %vm338, %v279, 0
        %v358 = vsel %vm338, %v280, 0
        %v361 = vsel %vm338, %v281, 0
        %363 = vmatprep.subr.mxu0 0.0
        %364 = vmatpush1.msra.mxu0 0.0
        %365 = vmatprep.subr.mxu0 0.0
        %366 = vmatpush1.msra.mxu0 0.0
        %367 = vmatprep.subr.mxu0 0.0
        %368 = vmatpush1.msra.mxu0 0.0
        %369 = vmatprep.subr.mxu0 0.0
        %370 = vmatpush1.msra.mxu0 0.0
        %371 = vmatprep.subr.mxu0 0.0
        %372 = vmatpush1.msra.mxu0 0.0
        %373 = vmatprep.subr.mxu0 0.0
        %374 = vmatpush1.msra.mxu0 0.0
        %375 = vmatprep.subr.mxu0 0.0
        %376 = vmatpush1.msra.mxu0 0.0
        %377 = vmatprep.subr.mxu0 0.0
        %378 = vmatpush1.msra.mxu0 0.0
        %379 = vmatprep.subr.mxu0 0.0
        %380 = vmatpush1.msra.mxu0 0.0
        %381 = vmatprep.subr.mxu0 0.0
        %382 = vmatpush1.msra.mxu0 0.0
        %383 = vmatprep.subr.mxu0 0.0
        %384 = vmatpush1.msra.mxu0 0.0
        %385 = vmatprep.subr.mxu0 0.0
        %386 = vmatpush1.msra.mxu0 0.0
        %387 = vmatprep.subr.mxu0 0.0
        %388 = vmatpush1.msra.mxu0 0.0
        %389 = vmatprep.subr.mxu0 0.0
        %390 = vmatpush1.msra.mxu0 0.0
        %391 = vmatprep.subr.mxu0 0.0
        %392 = vmatpush1.msra.mxu0 0.0
        %393 = vmatprep.subr.mxu0 0.0
        %394 = vmatpush1.msra.mxu0 %v337
        %395 = vmatprep.subr.mxu0 0.0
        %396 = vmatpush2.msra.mxu0 0.0
        %397 = vmatprep.subr.mxu0 0.0
        %398 = vmatpush2.msra.mxu0 0.0
        %399 = vmatprep.subr.mxu0 0.0
        %400 = vmatpush2.msra.mxu0 0.0
        %401 = vmatprep.subr.mxu0 0.0
        %402 = vmatpush2.msra.mxu0 0.0
        %403 = vmatprep.subr.mxu0 0.0
        %404 = vmatpush2.msra.mxu0 0.0
        %405 = vmatprep.subr.mxu0 0.0
        %406 = vmatpush2.msra.mxu0 0.0
        %407 = vmatprep.subr.mxu0 0.0
        %408 = vmatpush2.msra.mxu0 0.0
        %409 = vmatprep.subr.mxu0 0.0
        %410 = vmatpush2.msra.mxu0 0.0
        %411 = vmatprep.subr.mxu0 0.0
        %412 = vmatpush2.msra.mxu0 0.0
        %413 = vmatprep.subr.mxu0 0.0
        %414 = vmatpush2.msra.mxu0 0.0
        %415 = vmatprep.subr.mxu0 0.0
        %416 = vmatpush2.msra.mxu0 0.0
        %417 = vmatprep.subr.mxu0 0.0
        %418 = vmatpush2.msra.mxu0 0.0
        %419 = vmatprep.subr.mxu0 0.0
        %420 = vmatpush2.msra.mxu0 0.0
        %421 = vmatprep.subr.mxu0 0.0
        %422 = vmatpush2.msra.mxu0 0.0
        %423 = vmatprep.subr.mxu0 0.0
        %424 = vmatpush2.msra.mxu0 0.0
        %425 = vmatprep.subr.mxu0 0.0
        %426 = vmatpush2.msra.mxu0 0.0
        %427 = vmatprep.mubr.f32.mxu0 0.0
        %428 = vmatmul.mubr.f32.gmra.mxu0 %v340
        %v429 = vpop.f32.mrf.mxu0
        %v430 = vadd.f32 %v294, %v429
        %v431 = vpop.f32.mrf.mxu0
        %432 = vmatprep.mubr.f32.mxu0 0.0
        %433 = vmatmul.mubr.f32.gmra.mxu0 %v343
        %v434 = vpop.f32.mrf.mxu0
        %v435 = vadd.f32 %v299, %v434
        %v436 = vpop.f32.mrf.mxu0
        %437 = vmatprep.mubr.f32.mxu0 0.0
        %438 = vmatmul.mubr.f32.gmra.mxu0 %v346
        %v439 = vpop.f32.mrf.mxu0
        %v440 = vadd.f32 %v304, %v439
        %v441 = vpop.f32.mrf.mxu0
        %442 = vmatprep.mubr.f32.mxu0 0.0
        %443 = vmatmul.mubr.f32.gmra.mxu0 %v349
        %v444 = vpop.f32.mrf.mxu0
        %v445 = vadd.f32 %v309, %v444
        %v446 = vpop.f32.mrf.mxu0
        %447 = vmatprep.mubr.f32.mxu0 0.0
        %448 = vmatmul.mubr.f32.gmra.mxu0 %v352
        %v449 = vpop.f32.mrf.mxu0
        %v450 = vadd.f32 %v314, %v449
        %v451 = vpop.f32.mrf.mxu0
        %452 = vmatprep.mubr.f32.mxu0 0.0
        %453 = vmatmul.mubr.f32.gmra.mxu0 %v355
        %v454 = vpop.f32.mrf.mxu0
        %v455 = vadd.f32 %v319, %v454
        %v456 = vpop.f32.mrf.mxu0
        %457 = vmatprep.mubr.f32.mxu0 0.0
        %458 = vmatmul.mubr.f32.gmra.mxu0 %v358
        %v459 = vpop.f32.mrf.mxu0
        %v460 = vadd.f32 %v324, %v459
        %v461 = vpop.f32.mrf.mxu0
        %462 = vmatprep.mubr.f32.mxu0 0.0
        %463 = vmatmul.mubr.f32.gmra.mxu0 %v361
        %v464 = vpop.f32.mrf.mxu0
        %v465 = vadd.f32 %v329, %v464
        %v466 = vpop.f32.mrf.mxu0
        %467 = vdwg.mxu0
        %v468 = vmul.f32 %v430, %v430
        %v469 = vmul.f32 %v435, %v435
        %v470 = vmul.f32 %v440, %v440
        %v471 = vmul.f32 %v445, %v445
        %v472 = vmul.f32 %v450, %v450
        %v473 = vmul.f32 %v455, %v455
        %v474 = vmul.f32 %v460, %v460
        %v475 = vmul.f32 %v465, %v465
        %v476 = vmul.f32 %v430, %v468
        %v477 = vmul.f32 %v435, %v469
        %v478 = vmul.f32 %v440, %v470
        %v479 = vmul.f32 %v445, %v471
        %v480 = vmul.f32 %v450, %v472
        %v481 = vmul.f32 %v455, %v473
        %v482 = vmul.f32 %v460, %v474
        %v483 = vmul.f32 %v465, %v475
        %v484 = vmul.f32 %v476, 0.044715
        %v485 = vmul.f32 %v477, 0.044715
        %v486 = vmul.f32 %v478, 0.044715
        %v487 = vmul.f32 %v479, 0.044715
        %v488 = vmul.f32 %v480, 0.044715
        %v489 = vmul.f32 %v481, 0.044715
        %v490 = vmul.f32 %v482, 0.044715
        %v491 = vmul.f32 %v483, 0.044715
        %v492 = vadd.f32 %v430, %v484
        %v493 = vadd.f32 %v435, %v485
        %v494 = vadd.f32 %v440, %v486
        %v495 = vadd.f32 %v445, %v487
        %v496 = vadd.f32 %v450, %v488
        %v497 = vadd.f32 %v455, %v489
        %v498 = vadd.f32 %v460, %v490
        %v499 = vadd.f32 %v465, %v491
        %v500 = vmul.f32 %v492, 0.7978846
        %v501 = vmul.f32 %v493, 0.7978846
        %v502 = vmul.f32 %v494, 0.7978846
        %v503 = vmul.f32 %v495, 0.7978846
        %v504 = vmul.f32 %v496, 0.7978846
        %v505 = vmul.f32 %v497, 0.7978846
        %v506 = vmul.f32 %v498, 0.7978846
        %v507 = vmul.f32 %v499, 0.7978846
        %v508 = vtanh.pop %v500
        %v509 = vtanh.pop %v501
        %v510 = vtanh.pop %v502
        %v511 = vtanh.pop %v503
        %v512 = vtanh.pop %v504
        %v513 = vtanh.pop %v505
        %v514 = vtanh.pop %v506
        %v515 = vtanh.pop %v507
        %v516 = vadd.f32 %v508, 1.0
        %v517 = vadd.f32 %v509, 1.0
        %v518 = vadd.f32 %v510, 1.0
        %v519 = vadd.f32 %v511, 1.0
        %v520 = vadd.f32 %v512, 1.0
        %v521 = vadd.f32 %v513, 1.0
        %v522 = vadd.f32 %v514, 1.0
        %v523 = vadd.f32 %v515, 1.0
        %v524 = vmul.f32 %v516, 0.5
        %v525 = vmul.f32 %v517, 0.5
        %v526 = vmul.f32 %v518, 0.5
        %v527 = vmul.f32 %v519, 0.5
        %v528 = vmul.f32 %v520, 0.5
        %v529 = vmul.f32 %v521, 0.5
        %v530 = vmul.f32 %v522, 0.5
        %v531 = vmul.f32 %v523, 0.5
        %v532 = vmul.f32 %v430, %v524
        %v533 = vmul.f32 %v435, %v525
        %v534 = vmul.f32 %v440, %v526
        %v535 = vmul.f32 %v445, %v527
        %v536 = vmul.f32 %v450, %v528
        %v537 = vmul.f32 %v455, %v529
        %v538 = vmul.f32 %v460, %v530
        %v539 = vmul.f32 %v465, %v531
        %vm540 = vcmask 523264
        %v542 = vsel %vm540, %v282, 0
        %544 = vmatprep.subr.mxu0 0.0
        %545 = vmatpush1.msra.mxu0 0.0
        %546 = vmatprep.subr.mxu0 0.0
        %547 = vmatpush1.msra.mxu0 0.0
        %548 = vmatprep.subr.mxu0 0.0
        %549 = vmatpush1.msra.mxu0 0.0
        %550 = vmatprep.subr.mxu0 0.0
        %551 = vmatpush1.msra.mxu0 0.0
        %552 = vmatprep.subr.mxu0 0.0
        %553 = vmatpush1.msra.mxu0 0.0
        %554 = vmatprep.subr.mxu0 0.0
        %555 = vmatpush1.msra.mxu0 0.0
        %556 = vmatprep.subr.mxu0 0.0
        %557 = vmatpush1.msra.mxu0 0.0
        %558 = vmatprep.subr.mxu0 0.0
        %559 = vmatpush1.msra.mxu0 0.0
        %560 = vmatprep.subr.mxu0 0.0
        %561 = vmatpush1.msra.mxu0 %v539
        %562 = vmatprep.subr.mxu0 0.0
        %563 = vmatpush1.msra.mxu0 %v538
        %564 = vmatprep.subr.mxu0 0.0
        %565 = vmatpush1.msra.mxu0 %v537
        %566 = vmatprep.subr.mxu0 0.0
        %567 = vmatpush1.msra.mxu0 %v536
        %568 = vmatprep.subr.mxu0 0.0
        %569 = vmatpush1.msra.mxu0 %v535
        %570 = vmatprep.subr.mxu0 0.0
        %571 = vmatpush1.msra.mxu0 %v534
        %572 = vmatprep.subr.mxu0 0.0
        %573 = vmatpush1.msra.mxu0 %v533
        %574 = vmatprep.subr.mxu0 0.0
        %575 = vmatpush1.msra.mxu0 %v532
        %576 = vmatprep.subr.mxu0 0.0
        %577 = vmatpush2.msra.mxu0 0.0
        %578 = vmatprep.subr.mxu0 0.0
        %579 = vmatpush2.msra.mxu0 0.0
        %580 = vmatprep.subr.mxu0 0.0
        %581 = vmatpush2.msra.mxu0 0.0
        %582 = vmatprep.subr.mxu0 0.0
        %583 = vmatpush2.msra.mxu0 0.0
        %584 = vmatprep.subr.mxu0 0.0
        %585 = vmatpush2.msra.mxu0 0.0
        %586 = vmatprep.subr.mxu0 0.0
        %587 = vmatpush2.msra.mxu0 0.0
        %588 = vmatprep.subr.mxu0 0.0
        %589 = vmatpush2.msra.mxu0 0.0
        %590 = vmatprep.subr.mxu0 0.0
        %591 = vmatpush2.msra.mxu0 0.0
        %592 = vmatprep.subr.mxu0 0.0
        %593 = vmatpush2.msra.mxu0 0.0
        %594 = vmatprep.subr.mxu0 0.0
        %595 = vmatpush2.msra.mxu0 0.0
        %596 = vmatprep.subr.mxu0 0.0
        %597 = vmatpush2.msra.mxu0 0.0
        %598 = vmatprep.subr.mxu0 0.0
        %599 = vmatpush2.msra.mxu0 0.0
        %600 = vmatprep.subr.mxu0 0.0
        %601 = vmatpush2.msra.mxu0 0.0
        %602 = vmatprep.subr.mxu0 0.0
        %603 = vmatpush2.msra.mxu0 0.0
        %604 = vmatprep.subr.mxu0 0.0
        %605 = vmatpush2.msra.mxu0 0.0
        %606 = vmatprep.subr.mxu0 0.0
        %607 = vmatpush2.msra.mxu0 0.0
        %608 = vmatprep.mubr.f32.mxu0 0.0
        %609 = vmatmul.mubr.f32.gmra.mxu0 %v542
        %v610 = vpop.f32.mrf.mxu0
        %v611 = vadd.f32 0.0, %v610
        %v612 = vpop.f32.mrf.mxu0
        %613 = vdwg.mxu0
        %v614 = vstv %s273
        %v615 = vmul.f32 %v614, %v337
        %v616 = vadd.f32 %v615, %v611
        %v617 = vadd.f32 %v616, %v335
        %v618 = vmax.f32 %v617, -1.0
        %v619 = vmin.f32 %v618, 1.0
        %620 = vst [vmem:[%s265] sm:$0xff] %v619
        %s621 = sand.u32 %s176, 1
        %s622 = scalar_lea.sflag [#allocation4], %s621
        %s623 = sand.u32 %s176, 1
        %s624 = smul.addr %s623, 8
        %s625 = scalar_lea.vmem [#allocation3], %s624
        // Predicated region
        $region45: #{tpu_custom_call.1} parent=43 // pred_check
          %p626 = pneg %p186
        $region46: #{tpu_custom_call.1} parent=43 // pred_check_branch
          %628 = sbr.rel (%p626) target = $region48
        $region47: #{tpu_custom_call.1} parent=43 // pred_region
          %s630 = ssub.s32 128, 128
          %631 = vsyncadd %s622, %s630
          %s632 = sadd.s32 %s26, %s25
          %s633 = smul.addr %s632, 128
          %s634 = scalar_lea.hbm %s6, %s633
          %s636 = sshll.u32 %s625, 4
          %s637 = int_to_ptr.vmem [resolvable:$true] %s636
          %639 = dma.vmem_to_hbm [thread:$0]  %s637, 128, %s634, %s622
        $region48: #{tpu_custom_call.1} parent=43 // pred_fallthru
          _
      $region44: #{tpu_custom_call.1} parent=5 // pred_fallthru
        _
      %p640 = scmp.le.s32.totalorder 2, %s16
      // Predicated region
      $region49: #{tpu_custom_call.1} parent=5 // pred_check
        %p641 = pneg %p640
      $region50: #{tpu_custom_call.1} parent=5 // pred_check_branch
        %643 = sbr.rel (%p641) target = $region52
      $region51: #{tpu_custom_call.1} parent=5 // pred_region
        %s644 = ssub.s32 %s16, 2
        // Predicated region
        $region53: #{tpu_custom_call.1} parent=51 // pred_check
          %p645 = pneg %p192
        $region54: #{tpu_custom_call.1} parent=51 // pred_check_branch
          %647 = sbr.rel (%p645) target = $region56
        $region55: #{tpu_custom_call.1} parent=51 // pred_region
          %s648 = sand.u32 %s177, 1
          %s649 = scalar_lea.sflag [#allocation4], %s648
          %s650 = sand.u32 %s177, 1
          %s651 = smul.addr %s650, 8
          %s652 = scalar_lea.vmem [#allocation3], %s651
          %653 = dma.done %s649, 128
        $region56: #{tpu_custom_call.1} parent=51 // pred_fallthru
          _
      $region52: #{tpu_custom_call.1} parent=5 // pred_fallthru
        _
    $region6: #{tpu_custom_call.1} parent=1 // loop_footer
      %s20 = sadd.s32 1, %s16
    $region7: #{tpu_custom_call.1} parent=1 // loop_footer_branch
      %15 = sbr.rel target = $region3
    $region8: #{tpu_custom_call.1} parent=1 // loop_exit
      _
    %654 = vsyncpa [#allocation4], 1
    %s655 = scalar_lea.sflag [#allocation4], 1
    %656 = vsyncpa %s655, 1

</llo_original>
